<compile_context>
chip_gen: v7x
topology: tpu7x:2x2x1
jax: 0.10.0
libtpu: 0.0.40
codegen_flags: <defaults>
</compile_context>

<pallas_src>
import functools

import jax
import jax.numpy as jnp
import numpy as np
from jax.experimental import pallas as pl
from jax.experimental.pallas import tpu as pltpu

HIGHEST = jax.lax.Precision.HIGHEST  # used only by the pure-JAX reference


# ------------------------------ fused Pallas kernel --------------------------

def _fused_cha_kernel(xq_ref, xk_ref, xv_ref,
                      wq_ref, wk_ref, wv_ref, b_ref,
                      wt_ref, bt_ref, amask_ref, o_ref,
                      *, n_fold, l_per_b, cq_nh, ckv_nh):
    f32 = jnp.float32
    xq = xq_ref[0]                         # (Cq*P,  Bt*L)  lane-dense patches
    xk = xk_ref[0]                         # (Ckv*P, Bt*L)
    xv = xv_ref[0]                         # (Ckv*P, Bt*L)

    b = b_ref[...]                         # packed biases (Cq*nH + 2*Ckv*nH, 1)
    bq = b[0:cq_nh]
    bk = b[cq_nh:cq_nh + ckv_nh]
    bv = b[cq_nh + ckv_nh:cq_nh + 2 * ckv_nh]

    # grouped Conv2d projections == block-diagonal matmul + VPU bias add.
    # softmax scale is already folded into wq / bq.
    pq = jnp.dot(wq_ref[...], xq, preferred_element_type=f32) + bq   # (Cq*nH,  Bt*L)
    pk = jnp.dot(wk_ref[...], xk, preferred_element_type=f32) + bk   # (Ckv*nH, Bt*L)
    pv = jnp.dot(wv_ref[...], xv, preferred_element_type=f32) + bv   # (Ckv*nH, Bt*L)

    amask = amask_ref[...]                 # 0 / -1e30, kills cross-head blocks

    # channel attention per folded batch element (attention must not mix the
    # Bt batch elements sharing the lane axis); n_fold is tiny -> unrolled.
    att_chunks = []
    for bt in range(n_fold):
        sl = slice(bt * l_per_b, (bt + 1) * l_per_b)
        # NT contraction over L; Mosaic transposes the (small) pk chunk.
        # TODO(synk): for large L feed k pre-transposed so this is a plain NN dot.
        s = jax.lax.dot_general(pq[:, sl], pk[:, sl],
                                (((1,), (1,)), ((), ())),
                                preferred_element_type=f32)          # (nH*Cq, nH*Ckv)
        s = s + amask
        s = s - jnp.max(s, axis=-1, keepdims=True)
        p = jnp.exp(s)
        p = p * pl.reciprocal(jnp.sum(p, axis=-1, keepdims=True), approx=True)
        att_chunks.append(jnp.dot(p, pv[:, sl], preferred_element_type=f32))
    att = att_chunks[0] if n_fold == 1 else jnp.concatenate(att_chunks, axis=-1)

    # grouped ConvTranspose2d (kernel == stride) == block-diagonal matmul + bias;
    # gamma is already folded into wt / bt, so the residual is a plain add.
    y = jnp.dot(wt_ref[...], att, preferred_element_type=f32) + bt_ref[...]  # (Cq*P, Bt*L)
    o_ref[0] = (xq + y).astype(o_ref.dtype)


# ------------------------------ layout helpers --------------------------------

def _pick_batch_fold(B, L):
    """Smallest divisor of B whose fold reaches >=128 lanes (1 if L >= 128).

    Trade-off: larger folds shrink the parallel grid (fewer steps for the v7x
    megacore to shard), so stop at the first divisor that reaches lane density.
    """
    if L >= 128:
        return 1
    for cand in range(1, B + 1):
        if B % cand == 0 and cand * L >= 128:
            return cand
    return B


def _patchify(x, s, bt):
    """NCHW -> (B/bt, C*s*s, bt*(H/s)*(W/s)); rows ordered (c,kh,kw), lanes (b,i,j)."""
    B, C, H, W = x.shape
    Hs, Ws = H // s, W // s
    x = x.reshape(B // bt, bt, C, Hs, s, Ws, s)
    x = x.transpose(0, 2, 4, 6, 1, 3, 5)          # (Bg, C, kh, kw, bt, i, j)
    return x.reshape(B // bt, C * s * s, bt * Hs * Ws)


def _unpatchify(xp, C, s, Hs, Ws, bt):
    Bg = xp.shape[0]
    x = xp.reshape(Bg, C, s, s, bt, Hs, Ws)
    x = x.transpose(0, 4, 1, 5, 2, 6, 3)          # (Bg, bt, C, i, kh, j, kw)
    return x.reshape(Bg * bt, C, Hs * s, Ws * s)


def _block_diag(w):
    """(G, M, K) -> (G*M, G*K) block-diagonal matrix (tiny, built once per call)."""
    G, M, K = w.shape
    eye = jnp.eye(G, dtype=w.dtype)
    return (w[:, :, None, :] * eye[:, None, :, None]).reshape(G * M, G * K)


# ------------------------------ wrapper ---------------------------------------

def multi_head_attention_2d_cha(params, q, k, v, *, stride, num_heads, slide=0):
    B, Cq, Hq, Wq = q.shape
    _, Ckv, Hk, Wk = k.shape
    s, nH = stride, num_heads
    P = s * s
    if slide != 0:
        # TODO(synk): slide > 0 makes the PyTorch residual `q + out * gamma`
        # shape-inconsistent anyway; only slide == 0 is supported here.
        raise NotImplementedError("slide > 0 is not supported")
    dq_out = Cq - slide
    Hs, Ws = Hq // s, Wq // s
    L = Hs * Ws
    assert (Hk // s) * (Wk // s) == L, "q and k/v must produce the same token count"

    bt_fold = _pick_batch_fold(B, L)
    Bg = B // bt_fold
    lanes = bt_fold * L

    # lane-dense (possibly batch-folded) patch layout; one fused XLA transpose
    # per tensor.  TODO(synk): do this gather in-kernel to cut HBM traffic ~2x.
    xq = _patchify(q, s, bt_fold)                            # (Bg, Cq*P,  lanes)
    xk = _patchify(k, s, bt_fold)                            # (Bg, Ckv*P, lanes)
    xv = _patchify(v, s, bt_fold)

    scale = jnp.float32(float(L) ** (-0.5))
    gamma = jnp.asarray(params["gamma"], jnp.float32)

    # grouped-conv weights -> block-diagonal matmul weights (KB-scale, one-off);
    # softmax scale folded into the q projection, gamma into the deconv.
    wq_bd = _block_diag(params["wq"].reshape(Cq, nH, P)) * scale     # (Cq*nH,  Cq*P)
    wk_bd = _block_diag(params["wk"].reshape(Ckv, nH, P))            # (Ckv*nH, Ckv*P)
    wv_bd = _block_diag(params["wv"].reshape(Ckv, nH, P))
    b_qkv = jnp.concatenate([
        params["bq"].reshape(Cq * nH, 1) * scale,
        params["bk"].reshape(Ckv * nH, 1),
        params["bv"].reshape(Ckv * nH, 1)], axis=0)                  # packed biases

    wt_bd = _block_diag(
        params["wt"].reshape(dq_out, nH, P).transpose(0, 2, 1)) * gamma   # (Cq*P, Cq*nH)
    bt_b = jnp.repeat(params["bt"], P).reshape(dq_out * P, 1) * gamma

    # additive mask removing cross-head blocks of the (nH*Cq, nH*Ckv) score matrix
    rh = np.arange(nH * Cq) // Cq
    ch = np.arange(nH * Ckv) // Ckv
    amask = jnp.asarray(
        np.where(rh[:, None] == ch[None, :], 0.0, -1e30), dtype=jnp.float32)

    def _wspec(shape):  # batch-invariant operand, resident across the grid loop
        return pl.BlockSpec(shape, lambda b: (0, 0))

    out_patch = pl.pallas_call(
        functools.partial(_fused_cha_kernel, n_fold=bt_fold, l_per_b=L,
                          cq_nh=Cq * nH, ckv_nh=Ckv * nH),
        out_shape=jax.ShapeDtypeStruct((Bg, Cq * P, lanes), q.dtype),
        grid_spec=pltpu.PrefetchScalarGridSpec(
            num_scalar_prefetch=0,
            grid=(Bg,),
            in_specs=[
                pl.BlockSpec((1, Cq * P, lanes), lambda b: (b, 0, 0)),
                pl.BlockSpec((1, Ckv * P, lanes), lambda b: (b, 0, 0)),
                pl.BlockSpec((1, Ckv * P, lanes), lambda b: (b, 0, 0)),
                _wspec((Cq * nH, Cq * P)),
                _wspec((Ckv * nH, Ckv * P)),
                _wspec((Ckv * nH, Ckv * P)),
                _wspec(((Cq + 2 * Ckv) * nH, 1)),
                _wspec((dq_out * P, dq_out * nH)),
                _wspec((dq_out * P, 1)),
                _wspec((nH * Cq, nH * Ckv)),
            ],
            out_specs=pl.BlockSpec((1, Cq * P, lanes), lambda b: (b, 0, 0)),
        ),
        compiler_params=pltpu.CompilerParams(
            dimension_semantics=("parallel",),
            vmem_limit_bytes=48 * 1024 * 1024),
    )(xq, xk, xv, wq_bd, wk_bd, wv_bd, b_qkv, wt_bd, bt_b, amask)

    return _unpatchify(out_patch, Cq, s, Hs, Ws, bt_fold)


# --------------------------- params & pure-JAX reference ----------------------

def init_params(key, dim_q, dim_kv, stride, num_heads, slide=0):
    dq_out = dim_q - slide
    s = stride
    ks = jax.random.split(key, 8)
    scl = 0.1
    return {
        "wq": jax.random.normal(ks[0], (dim_q * num_heads, 1, s, s), jnp.float32) * scl,
        "bq": jax.random.normal(ks[1], (dim_q * num_heads,), jnp.float32) * scl,
        "wk": jax.random.normal(ks[2], (dim_kv * num_heads, 1, s, s), jnp.float32) * scl,
        "bk": jax.random.normal(ks[3], (dim_kv * num_heads,), jnp.float32) * scl,
        "wv": jax.random.normal(ks[4], (dim_kv * num_heads, 1, s, s), jnp.float32) * scl,
        "bv": jax.random.normal(ks[5], (dim_kv * num_heads,), jnp.float32) * scl,
        "wt": jax.random.normal(ks[6], (dq_out * num_heads, 1, s, s), jnp.float32) * scl,
        "bt": jax.random.normal(ks[7], (dq_out,), jnp.float32) * scl,
        # module __init__ sets gamma = 0; use a nonzero value so the attention
        # branch actually contributes in this synthetic test.
        "gamma": jnp.float32(0.5),
    }


def _ref_forward(params, q, k, v, *, stride, num_heads, slide=0):
    """Pure-JAX reference matching the PyTorch forward (dropout = identity)."""
    B, Cq, Hq, Wq = q.shape
    _, Ckv, _, _ = k.shape
    nH, s = num_heads, stride
    dq_out = Cq - slide

    def gconv(x, w, b, groups):
        y = jax.lax.conv_general_dilated(
            x, w, window_strides=(s, s), padding="VALID",
            dimension_numbers=("NCHW", "OIHW", "NCHW"),
            feature_group_count=groups, precision=HIGHEST)
        return y + b[None, :, None, None]

    pq = gconv(q, params["wq"], params["bq"], Cq).reshape(B, nH, Cq, -1)
    pk = gconv(k, params["wk"], params["bk"], Ckv).reshape(B, nH, Ckv, -1)
    pv = gconv(v, params["wv"], params["bv"], Ckv).reshape(B, nH, Ckv, -1)
    scale = pq.shape[3] ** (-0.5)
    attn = jnp.einsum("bhcl,bhdl->bhcd", pq, pk, precision=HIGHEST) * scale
    attn = jax.nn.softmax(attn, axis=-1)
    out = jnp.einsum("bhcd,bhdl->bhcl", attn, pv, precision=HIGHEST)
    if slide > 0:
        out = out[:, :, :-slide]
    Hs, Ws = Hq // s, Wq // s
    out = out.reshape(B, nH * dq_out, Hs, Ws)
    xg = out.reshape(B, dq_out, nH, Hs, Ws)
    wt = params["wt"].reshape(dq_out, nH, s, s)
    y = jnp.einsum("bghij,ghpq->bgipjq", xg, wt, precision=HIGHEST)
    y = y.reshape(B, dq_out, Hs * s, Ws * s) + params["bt"][None, :, None, None]
    return q + y * params["gamma"]


# ----------------------------------- main --------------------------------------

if __name__ == "__main__":
    B, dim_q, dim_kv, H, W = 2, 4, 4, 16, 16
    stride, num_heads, slide = 2, 8, 0

    key = jax.random.PRNGKey(0)
    kq, kk, kv_, kp = jax.random.split(key, 4)
    q = jax.random.normal(kq, (B, dim_q, H, W), jnp.float32)
    k = jax.random.normal(kk, (B, dim_kv, H, W), jnp.float32)
    v = jax.random.normal(kv_, (B, dim_kv, H, W), jnp.float32)
    params = init_params(kp, dim_q, dim_kv, stride, num_heads, slide)

    fwd = jax.jit(functools.partial(
        multi_head_attention_2d_cha, stride=stride, num_heads=num_heads, slide=slide))
    out = fwd(params, q, k, v)
    jax.block_until_ready(out)

    ref = _ref_forward(params, q, k, v, stride=stride, num_heads=num_heads, slide=slide)
    assert out.shape == q.shape and out.dtype == q.dtype
    np.testing.assert_allclose(np.asarray(out), np.asarray(ref), rtol=5e-3, atol=5e-3)
    print("KERNEL_OK")
</pallas_src>

<mosaic_0001>
module attributes {stable_mosaic.version = 11 : i64} {
  func.func @_fused_cha_kernel(%arg0: i32, %arg1: memref<1x16x128xf32, #tpu.memory_space<vmem>>, %arg2: memref<1x16x128xf32, #tpu.memory_space<vmem>>, %arg3: memref<1x16x128xf32, #tpu.memory_space<vmem>>, %arg4: memref<32x16xf32, #tpu.memory_space<vmem>>, %arg5: memref<32x16xf32, #tpu.memory_space<vmem>>, %arg6: memref<32x16xf32, #tpu.memory_space<vmem>>, %arg7: memref<96x1xf32, #tpu.memory_space<vmem>>, %arg8: memref<16x32xf32, #tpu.memory_space<vmem>>, %arg9: memref<16x1xf32, #tpu.memory_space<vmem>>, %arg10: memref<32x32xf32, #tpu.memory_space<vmem>>, %arg11: memref<1x16x128xf32, #tpu.memory_space<vmem>>) attributes {dimension_semantics = [#tpu.dimension_semantics<parallel>], iteration_bounds = array<i64: 1>, scalar_prefetch = 0 : i64, scratch_operands = 0 : i64, tpu.core_type = #tpu.core_type<tc>, window_params = [{transform_indices = @transform_0, window_bounds = array<i64: 1, 16, 128>}, {transform_indices = @transform_1, window_bounds = array<i64: 1, 16, 128>}, {transform_indices = @transform_2, window_bounds = array<i64: 1, 16, 128>}, {pipeline_mode = #tpu.pipeline_mode<synchronous>, transform_indices = @transform_3, window_bounds = array<i64: 32, 16>}, {pipeline_mode = #tpu.pipeline_mode<synchronous>, transform_indices = @transform_4, window_bounds = array<i64: 32, 16>}, {pipeline_mode = #tpu.pipeline_mode<synchronous>, transform_indices = @transform_5, window_bounds = array<i64: 32, 16>}, {pipeline_mode = #tpu.pipeline_mode<synchronous>, transform_indices = @transform_6, window_bounds = array<i64: 96, 1>}, {pipeline_mode = #tpu.pipeline_mode<synchronous>, transform_indices = @transform_7, window_bounds = array<i64: 16, 32>}, {pipeline_mode = #tpu.pipeline_mode<synchronous>, transform_indices = @transform_8, window_bounds = array<i64: 16, 1>}, {pipeline_mode = #tpu.pipeline_mode<synchronous>, transform_indices = @transform_9, window_bounds = array<i64: 32, 32>}, {transform_indices = @transform_10, window_bounds = array<i64: 1, 16, 128>}]} {
    %c0 = arith.constant 0 : index
    %c0_0 = arith.constant 0 : index
    %c0_1 = arith.constant 0 : index
    %0 = vector.load %arg1[%c0, %c0_0, %c0_1] : memref<1x16x128xf32, #tpu.memory_space<vmem>>, vector<1x16x128xf32>
    %1 = vector.shape_cast %0 : vector<1x16x128xf32> to vector<16x128xf32>
    %c0_2 = arith.constant 0 : index
    %c0_3 = arith.constant 0 : index
    %c0_4 = arith.constant 0 : index
    %2 = vector.load %arg2[%c0_2, %c0_3, %c0_4] : memref<1x16x128xf32, #tpu.memory_space<vmem>>, vector<1x16x128xf32>
    %3 = vector.shape_cast %2 : vector<1x16x128xf32> to vector<16x128xf32>
    %c0_5 = arith.constant 0 : index
    %c0_6 = arith.constant 0 : index
    %c0_7 = arith.constant 0 : index
    %4 = vector.load %arg3[%c0_5, %c0_6, %c0_7] : memref<1x16x128xf32, #tpu.memory_space<vmem>>, vector<1x16x128xf32>
    %5 = vector.shape_cast %4 : vector<1x16x128xf32> to vector<16x128xf32>
    %c0_8 = arith.constant 0 : index
    %c0_9 = arith.constant 0 : index
    %6 = vector.load %arg7[%c0_8, %c0_9] : memref<96x1xf32, #tpu.memory_space<vmem>>, vector<96x1xf32>
    %7 = vector.extract_strided_slice %6 {offsets = [0, 0], sizes = [32, 1], strides = [1, 1]} : vector<96x1xf32> to vector<32x1xf32>
    %8 = vector.extract_strided_slice %6 {offsets = [32, 0], sizes = [32, 1], strides = [1, 1]} : vector<96x1xf32> to vector<32x1xf32>
    %9 = vector.extract_strided_slice %6 {offsets = [64, 0], sizes = [32, 1], strides = [1, 1]} : vector<96x1xf32> to vector<32x1xf32>
    %c0_10 = arith.constant 0 : index
    %c0_11 = arith.constant 0 : index
    %10 = vector.load %arg4[%c0_10, %c0_11] : memref<32x16xf32, #tpu.memory_space<vmem>>, vector<32x16xf32>
    %cst = arith.constant dense<0.000000e+00> : vector<32x128xf32>
    %11 = tpu.matmul %10, %1, %cst {dimension_numbers = #tpu.dot_dimension_numbers<[1], [0], [0], [1], [0, 0, 1, 1], [], []>} : vector<32x16xf32>, vector<16x128xf32>, vector<32x128xf32> -> vector<32x128xf32>
    %12 = vector.broadcast %7 : vector<32x1xf32> to vector<32x128xf32>
    %13 = arith.addf %11, %12 : vector<32x128xf32>
    %c0_12 = arith.constant 0 : index
    %c0_13 = arith.constant 0 : index
    %14 = vector.load %arg5[%c0_12, %c0_13] : memref<32x16xf32, #tpu.memory_space<vmem>>, vector<32x16xf32>
    %cst_14 = arith.constant dense<0.000000e+00> : vector<32x128xf32>
    %15 = tpu.matmul %14, %3, %cst_14 {dimension_numbers = #tpu.dot_dimension_numbers<[1], [0], [0], [1], [0, 0, 1, 1], [], []>} : vector<32x16xf32>, vector<16x128xf32>, vector<32x128xf32> -> vector<32x128xf32>
    %16 = vector.broadcast %8 : vector<32x1xf32> to vector<32x128xf32>
    %17 = arith.addf %15, %16 : vector<32x128xf32>
    %c0_15 = arith.constant 0 : index
    %c0_16 = arith.constant 0 : index
    %18 = vector.load %arg6[%c0_15, %c0_16] : memref<32x16xf32, #tpu.memory_space<vmem>>, vector<32x16xf32>
    %cst_17 = arith.constant dense<0.000000e+00> : vector<32x128xf32>
    %19 = tpu.matmul %18, %5, %cst_17 {dimension_numbers = #tpu.dot_dimension_numbers<[1], [0], [0], [1], [0, 0, 1, 1], [], []>} : vector<32x16xf32>, vector<16x128xf32>, vector<32x128xf32> -> vector<32x128xf32>
    %20 = vector.broadcast %9 : vector<32x1xf32> to vector<32x128xf32>
    %21 = arith.addf %19, %20 : vector<32x128xf32>
    %c0_18 = arith.constant 0 : index
    %c0_19 = arith.constant 0 : index
    %22 = vector.load %arg10[%c0_18, %c0_19] : memref<32x32xf32, #tpu.memory_space<vmem>>, vector<32x32xf32>
    %23 = vector.extract_strided_slice %13 {offsets = [0, 0], sizes = [32, 64], strides = [1, 1]} : vector<32x128xf32> to vector<32x64xf32>
    %24 = vector.extract_strided_slice %17 {offsets = [0, 0], sizes = [32, 64], strides = [1, 1]} : vector<32x128xf32> to vector<32x64xf32>
    %cst_20 = arith.constant dense<0.000000e+00> : vector<32x32xf32>
    %25 = tpu.matmul %23, %24, %cst_20 {dimension_numbers = #tpu.dot_dimension_numbers<[1], [1], [0], [0], [0, 0, 1, 0], [], []>} : vector<32x64xf32>, vector<32x64xf32>, vector<32x32xf32> -> vector<32x32xf32>
    %26 = arith.addf %25, %22 : vector<32x32xf32>
    %cst_21 = arith.constant dense<0xFF800000> : vector<32xf32>
    %27 = vector.multi_reduction <maximumf>, %26, %cst_21 [1] : vector<32x32xf32> to vector<32xf32>
    %28 = vector.shape_cast %27 : vector<32xf32> to vector<32x1xf32>
    %29 = vector.broadcast %28 : vector<32x1xf32> to vector<32x32xf32>
    %30 = arith.subf %26, %29 : vector<32x32xf32>
    %31 = math.exp %30 : vector<32x32xf32>
    %cst_22 = arith.constant dense<0.000000e+00> : vector<32xf32>
    %32 = vector.multi_reduction <add>, %31, %cst_22 [1] : vector<32x32xf32> to vector<32xf32>
    %33 = vector.shape_cast %32 : vector<32xf32> to vector<32x1xf32>
    %34 = tpu.reciprocal %33 {approx = true} : vector<32x1xf32> -> vector<32x1xf32>
    %35 = vector.broadcast %34 : vector<32x1xf32> to vector<32x32xf32>
    %36 = arith.mulf %31, %35 : vector<32x32xf32>
    %37 = vector.extract_strided_slice %21 {offsets = [0, 0], sizes = [32, 64], strides = [1, 1]} : vector<32x128xf32> to vector<32x64xf32>
    %cst_23 = arith.constant dense<0.000000e+00> : vector<32x64xf32>
    %38 = tpu.matmul %36, %37, %cst_23 {dimension_numbers = #tpu.dot_dimension_numbers<[1], [0], [0], [1], [0, 0, 1, 1], [], []>} : vector<32x32xf32>, vector<32x64xf32>, vector<32x64xf32> -> vector<32x64xf32>
    %39 = vector.extract_strided_slice %13 {offsets = [0, 64], sizes = [32, 64], strides = [1, 1]} : vector<32x128xf32> to vector<32x64xf32>
    %40 = vector.extract_strided_slice %17 {offsets = [0, 64], sizes = [32, 64], strides = [1, 1]} : vector<32x128xf32> to vector<32x64xf32>
    %cst_24 = arith.constant dense<0.000000e+00> : vector<32x32xf32>
    %41 = tpu.matmul %39, %40, %cst_24 {dimension_numbers = #tpu.dot_dimension_numbers<[1], [1], [0], [0], [0, 0, 1, 0], [], []>} : vector<32x64xf32>, vector<32x64xf32>, vector<32x32xf32> -> vector<32x32xf32>
    %42 = arith.addf %41, %22 : vector<32x32xf32>
    %cst_25 = arith.constant dense<0xFF800000> : vector<32xf32>
    %43 = vector.multi_reduction <maximumf>, %42, %cst_25 [1] : vector<32x32xf32> to vector<32xf32>
    %44 = vector.shape_cast %43 : vector<32xf32> to vector<32x1xf32>
    %45 = vector.broadcast %44 : vector<32x1xf32> to vector<32x32xf32>
    %46 = arith.subf %42, %45 : vector<32x32xf32>
    %47 = math.exp %46 : vector<32x32xf32>
    %cst_26 = arith.constant dense<0.000000e+00> : vector<32xf32>
    %48 = vector.multi_reduction <add>, %47, %cst_26 [1] : vector<32x32xf32> to vector<32xf32>
    %49 = vector.shape_cast %48 : vector<32xf32> to vector<32x1xf32>
    %50 = tpu.reciprocal %49 {approx = true} : vector<32x1xf32> -> vector<32x1xf32>
    %51 = vector.broadcast %50 : vector<32x1xf32> to vector<32x32xf32>
    %52 = arith.mulf %47, %51 : vector<32x32xf32>
    %53 = vector.extract_strided_slice %21 {offsets = [0, 64], sizes = [32, 64], strides = [1, 1]} : vector<32x128xf32> to vector<32x64xf32>
    %cst_27 = arith.constant dense<0.000000e+00> : vector<32x64xf32>
    %54 = tpu.matmul %52, %53, %cst_27 {dimension_numbers = #tpu.dot_dimension_numbers<[1], [0], [0], [1], [0, 0, 1, 1], [], []>} : vector<32x32xf32>, vector<32x64xf32>, vector<32x64xf32> -> vector<32x64xf32>
    %55 = tpu.concatenate %38, %54 in 1 : vector<32x64xf32>, vector<32x64xf32> -> vector<32x128xf32>
    %c0_28 = arith.constant 0 : index
    %c0_29 = arith.constant 0 : index
    %56 = vector.load %arg8[%c0_28, %c0_29] : memref<16x32xf32, #tpu.memory_space<vmem>>, vector<16x32xf32>
    %cst_30 = arith.constant dense<0.000000e+00> : vector<16x128xf32>
    %57 = tpu.matmul %56, %55, %cst_30 {dimension_numbers = #tpu.dot_dimension_numbers<[1], [0], [0], [1], [0, 0, 1, 1], [], []>} : vector<16x32xf32>, vector<32x128xf32>, vector<16x128xf32> -> vector<16x128xf32>
    %c0_31 = arith.constant 0 : index
    %c0_32 = arith.constant 0 : index
    %58 = vector.load %arg9[%c0_31, %c0_32] : memref<16x1xf32, #tpu.memory_space<vmem>>, vector<16x1xf32>
    %59 = vector.broadcast %58 : vector<16x1xf32> to vector<16x128xf32>
    %60 = arith.addf %57, %59 : vector<16x128xf32>
    %61 = arith.addf %1, %60 : vector<16x128xf32>
    %c0_33 = arith.constant 0 : index
    %c0_34 = arith.constant 0 : index
    %c0_35 = arith.constant 0 : index
    %62 = vector.load %arg11[%c0_33, %c0_34, %c0_35] : memref<1x16x128xf32, #tpu.memory_space<vmem>>, vector<1x16x128xf32>
    %63 = vector.shape_cast %62 : vector<1x16x128xf32> to vector<16x128xf32>
    %64 = vector.shape_cast %61 : vector<16x128xf32> to vector<1x16x128xf32>
    tpu.vector_store %arg11[%c0_33, %c0_34, %c0_35], %64 {strides = array<i32>} : memref<1x16x128xf32, #tpu.memory_space<vmem>>, vector<1x16x128xf32>,
    return
  }
  func.func @transform_0(%arg0: i32) -> (i32, i32, i32) {
    %c0_i32 = arith.constant 0 : i32
    %c0_i32_0 = arith.constant 0 : i32
    %c0_i32_1 = arith.constant 0 : i32
    return %arg0, %c0_i32, %c0_i32_0 : i32, i32, i32
  }
  func.func @transform_1(%arg0: i32) -> (i32, i32, i32) {
    %c0_i32 = arith.constant 0 : i32
    %c0_i32_0 = arith.constant 0 : i32
    %c0_i32_1 = arith.constant 0 : i32
    return %arg0, %c0_i32, %c0_i32_0 : i32, i32, i32
  }
  func.func @transform_2(%arg0: i32) -> (i32, i32, i32) {
    %c0_i32 = arith.constant 0 : i32
    %c0_i32_0 = arith.constant 0 : i32
    %c0_i32_1 = arith.constant 0 : i32
    return %arg0, %c0_i32, %c0_i32_0 : i32, i32, i32
  }
  func.func @transform_3(%arg0: i32) -> (i32, i32) {
    %c0_i32 = arith.constant 0 : i32
    %c0_i32_0 = arith.constant 0 : i32
    %c0_i32_1 = arith.constant 0 : i32
    return %c0_i32, %c0_i32_0 : i32, i32
  }
  func.func @transform_4(%arg0: i32) -> (i32, i32) {
    %c0_i32 = arith.constant 0 : i32
    %c0_i32_0 = arith.constant 0 : i32
    %c0_i32_1 = arith.constant 0 : i32
    return %c0_i32, %c0_i32_0 : i32, i32
  }
  func.func @transform_5(%arg0: i32) -> (i32, i32) {
    %c0_i32 = arith.constant 0 : i32
    %c0_i32_0 = arith.constant 0 : i32
    %c0_i32_1 = arith.constant 0 : i32
    return %c0_i32, %c0_i32_0 : i32, i32
  }
  func.func @transform_6(%arg0: i32) -> (i32, i32) {
    %c0_i32 = arith.constant 0 : i32
    %c0_i32_0 = arith.constant 0 : i32
    %c0_i32_1 = arith.constant 0 : i32
    return %c0_i32, %c0_i32_0 : i32, i32
  }
  func.func @transform_7(%arg0: i32) -> (i32, i32) {
    %c0_i32 = arith.constant 0 : i32
    %c0_i32_0 = arith.constant 0 : i32
    %c0_i32_1 = arith.constant 0 : i32
    return %c0_i32, %c0_i32_0 : i32, i32
  }
  func.func @transform_8(%arg0: i32) -> (i32, i32) {
    %c0_i32 = arith.constant 0 : i32
    %c0_i32_0 = arith.constant 0 : i32
    %c0_i32_1 = arith.constant 0 : i32
    return %c0_i32, %c0_i32_0 : i32, i32
  }
  func.func @transform_9(%arg0: i32) -> (i32, i32) {
    %c0_i32 = arith.constant 0 : i32
    %c0_i32_0 = arith.constant 0 : i32
    %c0_i32_1 = arith.constant 0 : i32
    return %c0_i32, %c0_i32_0 : i32, i32
  }
  func.func @transform_10(%arg0: i32) -> (i32, i32, i32) {
    %c0_i32 = arith.constant 0 : i32
    %c0_i32_0 = arith.constant 0 : i32
    %c0_i32_1 = arith.constant 0 : i32
    return %arg0, %c0_i32, %c0_i32_0 : i32, i32, i32
  }
}

</mosaic_0001>

<llo_original>
// kernel: mul.54
$region0: #{mul.54}
  %s0 = inlined_call_operand.vmem [shape: f32[32,1,2,2], index: 0, kind: input, shape index: {}]
  %s1 = inlined_call_operand.vmem [shape: f32[4,8,4], index: 1, kind: output, shape index: {}]
  $region1: #{mul.54} parent=0
    #allocation0 [shape = 'u8[16384]{0}', space=vmem, size = 0x4000, scoped, tag = 'scoped mem for output reshape']
    #allocation1 [shape = 'u8[8192]{0}', space=vmem, size = 0x2000, scoped, tag = 'scoped mem for input reshape']
    %s3 = sshllo.u32 0, 2
    %s4 = scalar_lea.vmem %s0, 2
    %v5 = vld [vmem:[%s4] sm:%s3]
    %s6 = scalar_lea.vmem [#allocation1], 8
    %7 = vst [vmem:[%s6] sm:%s3] %v5
    %v8 = vld [vmem:[%s0] sm:%s3]
    %9 = vst [vmem:[#allocation1] sm:%s3] %v8
    %v10 = vld [vmem:[#allocation1] sm:$0x3]
    %vm11 = vcmask 64512
    %12 = vst.msk [vmem:[#allocation0] ss:$8 sm:$0x3] %vm11, %v10
    %s13 = scalar_lea.vmem [#allocation1], 8
    %v14 = vld [vmem:[%s13] sm:$0x3]
    %vm15 = vcmask 64512
    %s16 = scalar_lea.vmem [#allocation0], 16
    %17 = vst.msk [vmem:[%s16] ss:$8 sm:$0x3] %vm15, %v14
    %v18 = vld.sshfl [vmem:[#allocation1] sm:$0xff pattern:$0x99999810]
    %19 = vrot.lane.b32.xlu0 %v18, 120
    %v20 = vpop.permute.xlu0 %19
    %vm21 = vcmask 64512
    %s22 = scalar_lea.vmem [#allocation0], 1
    %23 = vst.msk [vmem:[%s22] ss:$8 sm:$0xf] %vm21, %v20
    %v24 = vld.sshfl [vmem:[#allocation1] sm:$0xff pattern:$0x99999810]
    %25 = vrot.lane.b32.xlu0 %v24, 112
    %v26 = vpop.permute.xlu0 %25
    %vm27 = vcmask 64512
    %s28 = scalar_lea.vmem [#allocation0], 2
    %29 = vst.msk [vmem:[%s28] ss:$8 sm:$0xf] %vm27, %v26
    %v30 = vld.sshfl [vmem:[#allocation1] sm:$0xff pattern:$0x99999810]
    %31 = vrot.lane.b32.xlu0 %v30, 104
    %v32 = vpop.permute.xlu0 %31
    %vm33 = vcmask 64512
    %s34 = scalar_lea.vmem [#allocation0], 3
    %35 = vst.msk [vmem:[%s34] ss:$8 sm:$0xf] %vm33, %v32
    %s37 = sshllo.u32 0, 4
    %v39 = vld [vmem:[#allocation0] sm:%s37]
    %s40 = sshllo.u32 0, 4
    %41 = vst [vmem:[%s1] sm:%s40] %v39
    %s42 = scalar_lea.vmem [#allocation0], 8
    %v43 = vld [vmem:[%s42] sm:%s37]
    %s44 = sshllo.u32 0, 4
    %s45 = scalar_lea.vmem %s1, 4
    %46 = vst [vmem:[%s45] sm:%s44] %v43
    %s47 = scalar_lea.vmem [#allocation0], 16
    %v48 = vld [vmem:[%s47] sm:%s37]
    %s49 = sshllo.u32 0, 4
    %s50 = smul.addr 4, 2
    %s51 = scalar_lea.vmem %s1, %s50
    %52 = vst [vmem:[%s51] sm:%s49] %v48
    %s53 = scalar_lea.vmem [#allocation0], 24
    %v54 = vld [vmem:[%s53] sm:%s37]
    %s55 = sshllo.u32 0, 4
    %s56 = smul.addr 4, 3
    %s57 = scalar_lea.vmem %s1, %s56
    %58 = vst [vmem:[%s57] sm:%s55] %v54

// kernel: multi_head_attention_2d_cha.1
$region0: #{multi_head_attention_2d_cha.1}
  #allocation0 [shape = 'u32[]', space=smem, size = 0x4, offset = 0x4, fixed_abs, tag = 'smem constant byte address 0x4 - core index']
  #allocation1 [shape = 'u32[144,128]{1,0:T(1,128)}', space=vmem, size = 0x12000, scoped, tag = 'internal scratch']
  %s0 = inlined_call_operand.vmem [shape: f32[1,16,128], index: 0, kind: input, shape index: {}]
  %s1 = inlined_call_operand.vmem [shape: f32[1,16,128], index: 1, kind: input, shape index: {}]
  %s2 = inlined_call_operand.vmem [shape: f32[1,16,128], index: 2, kind: input, shape index: {}]
  %s3 = inlined_call_operand.vmem [shape: f32[32,16], index: 3, kind: input, shape index: {}]
  %s4 = inlined_call_operand.vmem [shape: f32[32,16], index: 4, kind: input, shape index: {}]
  %s5 = inlined_call_operand.vmem [shape: f32[32,16], index: 5, kind: input, shape index: {}]
  %s6 = inlined_call_operand.vmem [shape: f32[96,1], index: 6, kind: input, shape index: {}]
  %s7 = inlined_call_operand.vmem [shape: f32[16,32], index: 7, kind: input, shape index: {}]
  %s8 = inlined_call_operand.vmem [shape: f32[16,1], index: 8, kind: input, shape index: {}]
  %s9 = inlined_call_operand.vmem [shape: f32[32,32], index: 9, kind: input, shape index: {}]
  %s10 = inlined_call_operand.vmem [shape: f32[1,16,128], index: 10, kind: output, shape index: {}]
  %s11 = sld [smem:[#allocation0]]
  $region50: #{multi_head_attention_2d_cha.1} parent=0
    _
  %s13 = ssub.s32 1, %s11
  %s14 = scalar_select 0, %s13, %s11
  // Predicated region
  $region2: #{multi_head_attention_2d_cha.1} parent=0 // pred_check
    _
  $region3: #{multi_head_attention_2d_cha.1} parent=0 // pred_check_branch
    %16 = sbr.rel (0) target = $region5
  $region4: #{multi_head_attention_2d_cha.1} parent=0 // pred_region
    _
  $region5: #{multi_head_attention_2d_cha.1} parent=0 // pred_fallthru
    _
  // Predicated region
  $region6: #{multi_head_attention_2d_cha.1} parent=0 // pred_check
    _
  $region7: #{multi_head_attention_2d_cha.1} parent=0 // pred_check_branch
    %18 = sbr.rel (0) target = $region9
  $region8: #{multi_head_attention_2d_cha.1} parent=0 // pred_region
    _
  $region9: #{multi_head_attention_2d_cha.1} parent=0 // pred_fallthru
    _
  // Predicated region
  $region10: #{multi_head_attention_2d_cha.1} parent=0 // pred_check
    _
  $region11: #{multi_head_attention_2d_cha.1} parent=0 // pred_check_branch
    %20 = sbr.rel (0) target = $region13
  $region12: #{multi_head_attention_2d_cha.1} parent=0 // pred_region
    _
  $region13: #{multi_head_attention_2d_cha.1} parent=0 // pred_fallthru
    _
  // Predicated region
  $region14: #{multi_head_attention_2d_cha.1} parent=0 // pred_check
    _
  $region15: #{multi_head_attention_2d_cha.1} parent=0 // pred_check_branch
    %22 = sbr.rel (0) target = $region17
  $region16: #{multi_head_attention_2d_cha.1} parent=0 // pred_region
    _
  $region17: #{multi_head_attention_2d_cha.1} parent=0 // pred_fallthru
    _
  // Predicated region
  $region18: #{multi_head_attention_2d_cha.1} parent=0 // pred_check
    _
  $region19: #{multi_head_attention_2d_cha.1} parent=0 // pred_check_branch
    %24 = sbr.rel (0) target = $region21
  $region20: #{multi_head_attention_2d_cha.1} parent=0 // pred_region
    _
  $region21: #{multi_head_attention_2d_cha.1} parent=0 // pred_fallthru
    _
  // Predicated region
  $region22: #{multi_head_attention_2d_cha.1} parent=0 // pred_check
    _
  $region23: #{multi_head_attention_2d_cha.1} parent=0 // pred_check_branch
    %26 = sbr.rel (0) target = $region25
  $region24: #{multi_head_attention_2d_cha.1} parent=0 // pred_region
    _
  $region25: #{multi_head_attention_2d_cha.1} parent=0 // pred_fallthru
    _
  // Predicated region
  $region26: #{multi_head_attention_2d_cha.1} parent=0 // pred_check
    _
  $region27: #{multi_head_attention_2d_cha.1} parent=0 // pred_check_branch
    %28 = sbr.rel (0) target = $region29
  $region28: #{multi_head_attention_2d_cha.1} parent=0 // pred_region
    _
  $region29: #{multi_head_attention_2d_cha.1} parent=0 // pred_fallthru
    _
  // Predicated region
  $region30: #{multi_head_attention_2d_cha.1} parent=0 // pred_check
    _
  $region31: #{multi_head_attention_2d_cha.1} parent=0 // pred_check_branch
    %30 = sbr.rel (0) target = $region33
  $region32: #{multi_head_attention_2d_cha.1} parent=0 // pred_region
    _
  $region33: #{multi_head_attention_2d_cha.1} parent=0 // pred_fallthru
    _
  // Predicated region
  $region34: #{multi_head_attention_2d_cha.1} parent=0 // pred_check
    _
  $region35: #{multi_head_attention_2d_cha.1} parent=0 // pred_check_branch
    %32 = sbr.rel (0) target = $region37
  $region36: #{multi_head_attention_2d_cha.1} parent=0 // pred_region
    _
  $region37: #{multi_head_attention_2d_cha.1} parent=0 // pred_fallthru
    _
  // Predicated region
  $region38: #{multi_head_attention_2d_cha.1} parent=0 // pred_check
    _
  $region39: #{multi_head_attention_2d_cha.1} parent=0 // pred_check_branch
    %34 = sbr.rel (0) target = $region41
  $region40: #{multi_head_attention_2d_cha.1} parent=0 // pred_region
    _
  $region41: #{multi_head_attention_2d_cha.1} parent=0 // pred_fallthru
    _
  %v35 = vld [vmem:[%s0] sm:$0xff]
  %v36 = vld [vmem:[%s0 + $0x8] sm:$0xff]
  %v37 = vld [vmem:[%s1] sm:$0xff]
  %v38 = vld [vmem:[%s1 + $0x8] sm:$0xff]
  %v39 = vld [vmem:[%s2] sm:$0xff]
  %v40 = vld [vmem:[%s2 + $0x8] sm:$0xff]
  %v41 = vld [vmem:[%s6] sm:$0xff]
  %v42 = vld [vmem:[%s6 + $0x8] sm:$0xff]
  %v43 = vld [vmem:[%s6 + $0x10] sm:$0xff]
  %v44 = vld [vmem:[%s6 + $0x18] sm:$0xff]
  %v45 = vld [vmem:[%s6 + $0x20] sm:$0xff]
  %v46 = vld [vmem:[%s6 + $0x28] sm:$0xff]
  %v47 = vld [vmem:[%s6 + $0x30] sm:$0xff]
  %v48 = vld [vmem:[%s6 + $0x38] sm:$0xff]
  %v49 = vld [vmem:[%s6 + $0x40] sm:$0xff]
  %v50 = vld [vmem:[%s6 + $0x48] sm:$0xff]
  %v51 = vld [vmem:[%s6 + $0x50] sm:$0xff]
  %v52 = vld [vmem:[%s6 + $0x58] sm:$0xff]
  %v53 = vld [vmem:[%s3] sm:$0xff]
  %v54 = vld [vmem:[%s3 + $0x8] sm:$0xff]
  %v55 = vld [vmem:[%s3 + $0x10] sm:$0xff]
  %v56 = vld [vmem:[%s3 + $0x18] sm:$0xff]
  %58 = vset.pattern.permute.xlu0 0
  %59 = vperm.xlu0 %58, %v41
  %v60 = vpop.permute.xlu0 %59
  %63 = vset.pattern.permute.xlu0 0
  %64 = vperm.xlu0 %63, %v42
  %v65 = vpop.permute.xlu0 %64
  %68 = vset.pattern.permute.xlu0 0
  %69 = vperm.xlu0 %68, %v43
  %v70 = vpop.permute.xlu0 %69
  %73 = vset.pattern.permute.xlu0 0
  %74 = vperm.xlu0 %73, %v44
  %v75 = vpop.permute.xlu0 %74
  %vm77 = vcmask 130048
  %v79 = vsel %vm77, %v53, 0
  %v82 = vsel %vm77, %v54, 0
  %v85 = vsel %vm77, %v55, 0
  %v88 = vsel %vm77, %v56, 0
  %90 = vmatprep.subr.mxu0 0.0
  %91 = vmatpush1.msra.mxu0 %v35
  %92 = vmatprep.subr.mxu0 0.0
  %93 = vmatpush1.msra.mxu0 %v36
  %94 = vmatprep.subr.mxu0 0.0
  %95 = vmatpush1.msra.mxu0 0.0
  %96 = vmatprep.subr.mxu0 0.0
  %97 = vmatpush1.msra.mxu0 0.0
  %98 = vmatprep.subr.mxu0 0.0
  %99 = vmatpush1.msra.mxu0 0.0
  %100 = vmatprep.subr.mxu0 0.0
  %101 = vmatpush1.msra.mxu0 0.0
  %102 = vmatprep.subr.mxu0 0.0
  %103 = vmatpush1.msra.mxu0 0.0
  %104 = vmatprep.subr.mxu0 0.0
  %105 = vmatpush1.msra.mxu0 0.0
  %106 = vmatprep.subr.mxu0 0.0
  %107 = vmatpush1.msra.mxu0 0.0
  %108 = vmatprep.subr.mxu0 0.0
  %109 = vmatpush1.msra.mxu0 0.0
  %110 = vmatprep.subr.mxu0 0.0
  %111 = vmatpush1.msra.mxu0 0.0
  %112 = vmatprep.subr.mxu0 0.0
  %113 = vmatpush1.msra.mxu0 0.0
  %114 = vmatprep.subr.mxu0 0.0
  %115 = vmatpush1.msra.mxu0 0.0
  %116 = vmatprep.subr.mxu0 0.0
  %117 = vmatpush1.msra.mxu0 0.0
  %118 = vmatprep.subr.mxu0 0.0
  %119 = vmatpush1.msra.mxu0 0.0
  %120 = vmatprep.subr.mxu0 0.0
  %121 = vmatpush1.msra.mxu0 0.0
  %122 = vmatprep.subr.mxu0 0.0
  %123 = vmatpush1.msra.mxu0 0.0
  %124 = vmatprep.subr.mxu0 0.0
  %125 = vmatpush1.msra.mxu0 0.0
  %126 = vmatprep.subr.mxu0 0.0
  %127 = vmatpush1.msra.mxu0 0.0
  %128 = vmatprep.subr.mxu0 0.0
  %129 = vmatpush1.msra.mxu0 0.0
  %130 = vmatprep.subr.mxu0 0.0
  %131 = vmatpush1.msra.mxu0 0.0
  %132 = vmatprep.subr.mxu0 0.0
  %133 = vmatpush1.msra.mxu0 0.0
  %134 = vmatprep.subr.mxu0 0.0
  %135 = vmatpush1.msra.mxu0 0.0
  %136 = vmatprep.subr.mxu0 0.0
  %137 = vmatpush1.msra.mxu0 0.0
  %138 = vmatprep.subr.mxu0 0.0
  %139 = vmatpush1.msra.mxu0 0.0
  %140 = vmatprep.subr.mxu0 0.0
  %141 = vmatpush1.msra.mxu0 0.0
  %142 = vmatprep.subr.mxu0 0.0
  %143 = vmatpush1.msra.mxu0 0.0
  %144 = vmatprep.subr.mxu0 0.0
  %145 = vmatpush1.msra.mxu0 0.0
  %146 = vmatprep.subr.mxu0 0.0
  %147 = vmatpush1.msra.mxu0 0.0
  %148 = vmatprep.subr.mxu0 0.0
  %149 = vmatpush1.msra.mxu0 0.0
  %150 = vmatprep.subr.mxu0 0.0
  %151 = vmatpush1.msra.mxu0 0.0
  %152 = vmatprep.subr.mxu0 0.0
  %153 = vmatpush1.msra.mxu0 0.0
  %154 = vmatprep.mubr.f32.mxu0 0.0
  %155 = vmatmul.mubr.f32.gmra.mrb[0].mxu0 %v79
  %v156 = vpop.f32.mrb[0].mxu0
  %v157 = vadd.f32 %v60, %v156
  %v158 = vpop.f32.mrb[0].mxu0
  %159 = vmatprep.mubr.f32.mxu0 0.0
  %160 = vmatmul.mubr.f32.gmra.mrb[0].mxu0 %v82
  %v161 = vpop.f32.mrb[0].mxu0
  %v162 = vadd.f32 %v65, %v161
  %v163 = vpop.f32.mrb[0].mxu0
  %164 = vmatprep.mubr.f32.mxu0 0.0
  %165 = vmatmul.mubr.f32.gmra.mrb[0].mxu0 %v85
  %v166 = vpop.f32.mrb[0].mxu0
  %v167 = vadd.f32 %v70, %v166
  %v168 = vpop.f32.mrb[0].mxu0
  %169 = vmatprep.mubr.f32.mxu0 0.0
  %170 = vmatmul.mubr.f32.gmra.mrb[0].mxu0 %v88
  %v171 = vpop.f32.mrb[0].mxu0
  %v172 = vadd.f32 %v75, %v171
  %v173 = vpop.f32.mrb[0].mxu0
  %174 = vdwg.mxu0
  %v175 = vld [vmem:[%s4] sm:$0xff]
  %v176 = vld [vmem:[%s4 + $0x8] sm:$0xff]
  %v177 = vld [vmem:[%s4 + $0x10] sm:$0xff]
  %v178 = vld [vmem:[%s4 + $0x18] sm:$0xff]
  %180 = vset.pattern.permute.xlu0 0
  %181 = vperm.xlu0 %180, %v45
  %v182 = vpop.permute.xlu0 %181
  %185 = vset.pattern.permute.xlu0 0
  %186 = vperm.xlu0 %185, %v46
  %v187 = vpop.permute.xlu0 %186
  %190 = vset.pattern.permute.xlu0 0
  %191 = vperm.xlu0 %190, %v47
  %v192 = vpop.permute.xlu0 %191
  %195 = vset.pattern.permute.xlu0 0
  %196 = vperm.xlu0 %195, %v48
  %v197 = vpop.permute.xlu0 %196
  %v200 = vsel %vm77, %v175, 0
  %v203 = vsel %vm77, %v176, 0
  %v206 = vsel %vm77, %v177, 0
  %v209 = vsel %vm77, %v178, 0
  %211 = vmatprep.subr.mxu0 0.0
  %212 = vmatpush1.msra.mxu0 %v37
  %213 = vmatprep.subr.mxu0 0.0
  %214 = vmatpush1.msra.mxu0 %v38
  %215 = vmatprep.subr.mxu0 0.0
  %216 = vmatpush1.msra.mxu0 0.0
  %217 = vmatprep.subr.mxu0 0.0
  %218 = vmatpush1.msra.mxu0 0.0
  %219 = vmatprep.subr.mxu0 0.0
  %220 = vmatpush1.msra.mxu0 0.0
  %221 = vmatprep.subr.mxu0 0.0
  %222 = vmatpush1.msra.mxu0 0.0
  %223 = vmatprep.subr.mxu0 0.0
  %224 = vmatpush1.msra.mxu0 0.0
  %225 = vmatprep.subr.mxu0 0.0
  %226 = vmatpush1.msra.mxu0 0.0
  %227 = vmatprep.subr.mxu0 0.0
  %228 = vmatpush1.msra.mxu0 0.0
  %229 = vmatprep.subr.mxu0 0.0
  %230 = vmatpush1.msra.mxu0 0.0
  %231 = vmatprep.subr.mxu0 0.0
  %232 = vmatpush1.msra.mxu0 0.0
  %233 = vmatprep.subr.mxu0 0.0
  %234 = vmatpush1.msra.mxu0 0.0
  %235 = vmatprep.subr.mxu0 0.0
  %236 = vmatpush1.msra.mxu0 0.0
  %237 = vmatprep.subr.mxu0 0.0
  %238 = vmatpush1.msra.mxu0 0.0
  %239 = vmatprep.subr.mxu0 0.0
  %240 = vmatpush1.msra.mxu0 0.0
  %241 = vmatprep.subr.mxu0 0.0
  %242 = vmatpush1.msra.mxu0 0.0
  %243 = vmatprep.subr.mxu0 0.0
  %244 = vmatpush1.msra.mxu0 0.0
  %245 = vmatprep.subr.mxu0 0.0
  %246 = vmatpush1.msra.mxu0 0.0
  %247 = vmatprep.subr.mxu0 0.0
  %248 = vmatpush1.msra.mxu0 0.0
  %249 = vmatprep.subr.mxu0 0.0
  %250 = vmatpush1.msra.mxu0 0.0
  %251 = vmatprep.subr.mxu0 0.0
  %252 = vmatpush1.msra.mxu0 0.0
  %253 = vmatprep.subr.mxu0 0.0
  %254 = vmatpush1.msra.mxu0 0.0
  %255 = vmatprep.subr.mxu0 0.0
  %256 = vmatpush1.msra.mxu0 0.0
  %257 = vmatprep.subr.mxu0 0.0
  %258 = vmatpush1.msra.mxu0 0.0
  %259 = vmatprep.subr.mxu0 0.0
  %260 = vmatpush1.msra.mxu0 0.0
  %261 = vmatprep.subr.mxu0 0.0
  %262 = vmatpush1.msra.mxu0 0.0
  %263 = vmatprep.subr.mxu0 0.0
  %264 = vmatpush1.msra.mxu0 0.0
  %265 = vmatprep.subr.mxu0 0.0
  %266 = vmatpush1.msra.mxu0 0.0
  %267 = vmatprep.subr.mxu0 0.0
  %268 = vmatpush1.msra.mxu0 0.0
  %269 = vmatprep.subr.mxu0 0.0
  %270 = vmatpush1.msra.mxu0 0.0
  %271 = vmatprep.subr.mxu0 0.0
  %272 = vmatpush1.msra.mxu0 0.0
  %273 = vmatprep.subr.mxu0 0.0
  %274 = vmatpush1.msra.mxu0 0.0
  %275 = vmatprep.mubr.f32.mxu0 0.0
  %276 = vmatmul.mubr.f32.gmra.mrb[0].mxu0 %v200
  %v277 = vpop.f32.mrb[0].mxu0
  %v278 = vadd.f32 %v182, %v277
  %v279 = vpop.f32.mrb[0].mxu0
  %280 = vmatprep.mubr.f32.mxu0 0.0
  %281 = vmatmul.mubr.f32.gmra.mrb[0].mxu0 %v203
  %v282 = vpop.f32.mrb[0].mxu0
  %v283 = vadd.f32 %v187, %v282
  %v284 = vpop.f32.mrb[0].mxu0
  %285 = vmatprep.mubr.f32.mxu0 0.0
  %286 = vmatmul.mubr.f32.gmra.mrb[0].mxu0 %v206
  %v287 = vpop.f32.mrb[0].mxu0
  %v288 = vadd.f32 %v192, %v287
  %v289 = vpop.f32.mrb[0].mxu0
  %290 = vmatprep.mubr.f32.mxu0 0.0
  %291 = vmatmul.mubr.f32.gmra.mrb[0].mxu0 %v209
  %v292 = vpop.f32.mrb[0].mxu0
  %v293 = vadd.f32 %v197, %v292
  %v294 = vpop.f32.mrb[0].mxu0
  %295 = vdwg.mxu0
  %v296 = vld [vmem:[%s5] sm:$0xff]
  %v297 = vld [vmem:[%s5 + $0x8] sm:$0xff]
  %v298 = vld [vmem:[%s5 + $0x10] sm:$0xff]
  %v299 = vld [vmem:[%s5 + $0x18] sm:$0xff]
  %301 = vset.pattern.permute.xlu0 0
  %302 = vperm.xlu0 %301, %v49
  %v303 = vpop.permute.xlu0 %302
  %306 = vset.pattern.permute.xlu0 0
  %307 = vperm.xlu0 %306, %v50
  %v308 = vpop.permute.xlu0 %307
  %311 = vset.pattern.permute.xlu0 0
  %312 = vperm.xlu0 %311, %v51
  %v313 = vpop.permute.xlu0 %312
  %316 = vset.pattern.permute.xlu0 0
  %317 = vperm.xlu0 %316, %v52
  %v318 = vpop.permute.xlu0 %317
  %v321 = vsel %vm77, %v296, 0
  %v324 = vsel %vm77, %v297, 0
  %v327 = vsel %vm77, %v298, 0
  %v330 = vsel %vm77, %v299, 0
  %332 = vmatprep.subr.mxu0 0.0
  %333 = vmatpush1.msra.mxu0 %v39
  %334 = vmatprep.subr.mxu0 0.0
  %335 = vmatpush1.msra.mxu0 %v40
  %336 = vmatprep.subr.mxu0 0.0
  %337 = vmatpush1.msra.mxu0 0.0
  %338 = vmatprep.subr.mxu0 0.0
  %339 = vmatpush1.msra.mxu0 0.0
  %340 = vmatprep.subr.mxu0 0.0
  %341 = vmatpush1.msra.mxu0 0.0
  %342 = vmatprep.subr.mxu0 0.0
  %343 = vmatpush1.msra.mxu0 0.0
  %344 = vmatprep.subr.mxu0 0.0
  %345 = vmatpush1.msra.mxu0 0.0
  %346 = vmatprep.subr.mxu0 0.0
  %347 = vmatpush1.msra.mxu0 0.0
  %348 = vmatprep.subr.mxu0 0.0
  %349 = vmatpush1.msra.mxu0 0.0
  %350 = vmatprep.subr.mxu0 0.0
  %351 = vmatpush1.msra.mxu0 0.0
  %352 = vmatprep.subr.mxu0 0.0
  %353 = vmatpush1.msra.mxu0 0.0
  %354 = vmatprep.subr.mxu0 0.0
  %355 = vmatpush1.msra.mxu0 0.0
  %356 = vmatprep.subr.mxu0 0.0
  %357 = vmatpush1.msra.mxu0 0.0
  %358 = vmatprep.subr.mxu0 0.0
  %359 = vmatpush1.msra.mxu0 0.0
  %360 = vmatprep.subr.mxu0 0.0
  %361 = vmatpush1.msra.mxu0 0.0
  %362 = vmatprep.subr.mxu0 0.0
  %363 = vmatpush1.msra.mxu0 0.0
  %364 = vmatprep.subr.mxu0 0.0
  %365 = vmatpush1.msra.mxu0 0.0
  %366 = vmatprep.subr.mxu0 0.0
  %367 = vmatpush1.msra.mxu0 0.0
  %368 = vmatprep.subr.mxu0 0.0
  %369 = vmatpush1.msra.mxu0 0.0
  %370 = vmatprep.subr.mxu0 0.0
  %371 = vmatpush1.msra.mxu0 0.0
  %372 = vmatprep.subr.mxu0 0.0
  %373 = vmatpush1.msra.mxu0 0.0
  %374 = vmatprep.subr.mxu0 0.0
  %375 = vmatpush1.msra.mxu0 0.0
  %376 = vmatprep.subr.mxu0 0.0
  %377 = vmatpush1.msra.mxu0 0.0
  %378 = vmatprep.subr.mxu0 0.0
  %379 = vmatpush1.msra.mxu0 0.0
  %380 = vmatprep.subr.mxu0 0.0
  %381 = vmatpush1.msra.mxu0 0.0
  %382 = vmatprep.subr.mxu0 0.0
  %383 = vmatpush1.msra.mxu0 0.0
  %384 = vmatprep.subr.mxu0 0.0
  %385 = vmatpush1.msra.mxu0 0.0
  %386 = vmatprep.subr.mxu0 0.0
  %387 = vmatpush1.msra.mxu0 0.0
  %388 = vmatprep.subr.mxu0 0.0
  %389 = vmatpush1.msra.mxu0 0.0
  %390 = vmatprep.subr.mxu0 0.0
  %391 = vmatpush1.msra.mxu0 0.0
  %392 = vmatprep.subr.mxu0 0.0
  %393 = vmatpush1.msra.mxu0 0.0
  %394 = vmatprep.subr.mxu0 0.0
  %395 = vmatpush1.msra.mxu0 0.0
  %396 = vmatprep.mubr.f32.mxu0 0.0
  %397 = vmatmul.mubr.f32.gmra.mrb[0].mxu0 %v321
  %v398 = vpop.f32.mrb[0].mxu0
  %v399 = vadd.f32 %v303, %v398
  %v400 = vpop.f32.mrb[0].mxu0
  %401 = vmatprep.mubr.f32.mxu0 0.0
  %402 = vmatmul.mubr.f32.gmra.mrb[0].mxu0 %v324
  %v403 = vpop.f32.mrb[0].mxu0
  %v404 = vadd.f32 %v308, %v403
  %v405 = vpop.f32.mrb[0].mxu0
  %406 = vmatprep.mubr.f32.mxu0 0.0
  %407 = vmatmul.mubr.f32.gmra.mrb[0].mxu0 %v327
  %v408 = vpop.f32.mrb[0].mxu0
  %v409 = vadd.f32 %v313, %v408
  %v410 = vpop.f32.mrb[0].mxu0
  %411 = vmatprep.mubr.f32.mxu0 0.0
  %412 = vmatmul.mubr.f32.gmra.mrb[0].mxu0 %v330
  %v413 = vpop.f32.mrb[0].mxu0
  %v414 = vadd.f32 %v318, %v413
  %v415 = vpop.f32.mrb[0].mxu0
  %416 = vdwg.mxu0
  %v417 = vld [vmem:[%s9] sm:$0xff]
  %v418 = vld [vmem:[%s9 + $0x8] sm:$0xff]
  %v419 = vld [vmem:[%s9 + $0x10] sm:$0xff]
  %v420 = vld [vmem:[%s9 + $0x18] sm:$0xff]
  %vm421 = vcmask 523264
  %v423 = vsel %vm421, %v157, 0
  %v426 = vsel %vm421, %v162, 0
  %v429 = vsel %vm421, %v167, 0
  %v432 = vsel %vm421, %v172, 0
  %v435 = vsel %vm421, %v278, 0
  %v438 = vsel %vm421, %v283, 0
  %v441 = vsel %vm421, %v288, 0
  %v444 = vsel %vm421, %v293, 0
  %446 = vmatprep.subr.mxu0 0.0
  %447 = vmatpush1.xpose.msra.mxu0 %v435
  %448 = vmatprep.subr.mxu0 0.0
  %449 = vmatpush1.xpose.msra.mxu0 %v438
  %450 = vmatprep.subr.mxu0 0.0
  %451 = vmatpush1.xpose.msra.mxu0 %v441
  %452 = vmatprep.subr.mxu0 0.0
  %453 = vmatpush1.xpose.msra.mxu0 %v444
  %454 = vmatprep.subr.mxu0 0.0
  %455 = vmatpush1.xpose.msra.mxu0 0.0
  %456 = vmatprep.subr.mxu0 0.0
  %457 = vmatpush1.xpose.msra.mxu0 0.0
  %458 = vmatprep.subr.mxu0 0.0
  %459 = vmatpush1.xpose.msra.mxu0 0.0
  %460 = vmatprep.subr.mxu0 0.0
  %461 = vmatpush1.xpose.msra.mxu0 0.0
  %462 = vmatprep.subr.mxu0 0.0
  %463 = vmatpush1.xpose.msra.mxu0 0.0
  %464 = vmatprep.subr.mxu0 0.0
  %465 = vmatpush1.xpose.msra.mxu0 0.0
  %466 = vmatprep.subr.mxu0 0.0
  %467 = vmatpush1.xpose.msra.mxu0 0.0
  %468 = vmatprep.subr.mxu0 0.0
  %469 = vmatpush1.xpose.msra.mxu0 0.0
  %470 = vmatprep.subr.mxu0 0.0
  %471 = vmatpush1.xpose.msra.mxu0 0.0
  %472 = vmatprep.subr.mxu0 0.0
  %473 = vmatpush1.xpose.msra.mxu0 0.0
  %474 = vmatprep.subr.mxu0 0.0
  %475 = vmatpush1.xpose.msra.mxu0 0.0
  %476 = vmatprep.subr.mxu0 0.0
  %477 = vmatpush1.xpose.msra.mxu0 0.0
  %478 = vmatprep.subr.mxu0 0.0
  %479 = vmatpush1.xpose.msra.mxu0 0.0
  %480 = vmatprep.subr.mxu0 0.0
  %481 = vmatpush1.xpose.msra.mxu0 0.0
  %482 = vmatprep.subr.mxu0 0.0
  %483 = vmatpush1.xpose.msra.mxu0 0.0
  %484 = vmatprep.subr.mxu0 0.0
  %485 = vmatpush1.xpose.msra.mxu0 0.0
  %486 = vmatprep.subr.mxu0 0.0
  %487 = vmatpush1.xpose.msra.mxu0 0.0
  %488 = vmatprep.subr.mxu0 0.0
  %489 = vmatpush1.xpose.msra.mxu0 0.0
  %490 = vmatprep.subr.mxu0 0.0
  %491 = vmatpush1.xpose.msra.mxu0 0.0
  %492 = vmatprep.subr.mxu0 0.0
  %493 = vmatpush1.xpose.msra.mxu0 0.0
  %494 = vmatprep.subr.mxu0 0.0
  %495 = vmatpush1.xpose.msra.mxu0 0.0
  %496 = vmatprep.subr.mxu0 0.0
  %497 = vmatpush1.xpose.msra.mxu0 0.0
  %498 = vmatprep.subr.mxu0 0.0
  %499 = vmatpush1.xpose.msra.mxu0 0.0
  %500 = vmatprep.subr.mxu0 0.0
  %501 = vmatpush1.xpose.msra.mxu0 0.0
  %502 = vmatprep.subr.mxu0 0.0
  %503 = vmatpush1.xpose.msra.mxu0 0.0
  %504 = vmatprep.subr.mxu0 0.0
  %505 = vmatpush1.xpose.msra.mxu0 0.0
  %506 = vmatprep.subr.mxu0 0.0
  %507 = vmatpush1.xpose.msra.mxu0 0.0
  %508 = vmatprep.subr.mxu0 0.0
  %509 = vmatpush1.xpose.msra.mxu0 0.0
  %510 = vmatprep.mubr.f32.mxu0 0.0
  %511 = vmatmul.mubr.f32.gmra.mrb[0].mxu0 %v423
  %v512 = vpop.f32.mrb[0].mxu0
  %v513 = vadd.f32 %v417, %v512
  %v514 = vpop.f32.mrb[0].mxu0
  %515 = vmatprep.mubr.f32.mxu0 0.0
  %516 = vmatmul.mubr.f32.gmra.mrb[0].mxu0 %v426
  %v517 = vpop.f32.mrb[0].mxu0
  %v518 = vadd.f32 %v418, %v517
  %v519 = vpop.f32.mrb[0].mxu0
  %520 = vmatprep.mubr.f32.mxu0 0.0
  %521 = vmatmul.mubr.f32.gmra.mrb[0].mxu0 %v429
  %v522 = vpop.f32.mrb[0].mxu0
  %v523 = vadd.f32 %v419, %v522
  %v524 = vpop.f32.mrb[0].mxu0
  %525 = vmatprep.mubr.f32.mxu0 0.0
  %526 = vmatmul.mubr.f32.gmra.mrb[0].mxu0 %v432
  %v527 = vpop.f32.mrb[0].mxu0
  %v528 = vadd.f32 %v420, %v527
  %v529 = vpop.f32.mrb[0].mxu0
  %530 = vdwg.mxu0
  %vm531 = vcmask 261120
  %v532 = vsel %vm531, %v513, -inf
  %533 = vmax.xlane.f32.xlu0 %v532
  %v534 = vpop.xlane.xlu0 %533
  %v535 = vsel %vm531, %v518, -inf
  %536 = vmax.xlane.f32.xlu0 %v535
  %v537 = vpop.xlane.xlu0 %536
  %v538 = vsel %vm531, %v523, -inf
  %539 = vmax.xlane.f32.xlu0 %v538
  %v540 = vpop.xlane.xlu0 %539
  %v541 = vsel %vm531, %v528, -inf
  %542 = vmax.xlane.f32.xlu0 %v541
  %v543 = vpop.xlane.xlu0 %542
  %v544 = vsub.f32 %v513, %v534
  %v545 = vsub.f32 %v518, %v537
  %v546 = vsub.f32 %v523, %v540
  %v547 = vsub.f32 %v528, %v543
  %v548 = vmul.f32 %v544, 1.442695
  %v549 = vpow.pop %v548
  %v550 = vmul.f32 %v545, 1.442695
  %v551 = vpow.pop %v550
  %v552 = vmul.f32 %v546, 1.442695
  %v553 = vpow.pop %v552
  %v554 = vmul.f32 %v547, 1.442695
  %v555 = vpow.pop %v554
  %v556 = vsel %vm531, %v549, 0.0
  %557 = vadd.xlane.f32.xlu0 %v556
  %v558 = vpop.xlane.xlu0 %557
  %v559 = vsel %vm531, %v551, 0.0
  %560 = vadd.xlane.f32.xlu0 %v559
  %v561 = vpop.xlane.xlu0 %560
  %v562 = vsel %vm531, %v553, 0.0
  %563 = vadd.xlane.f32.xlu0 %v562
  %v564 = vpop.xlane.xlu0 %563
  %v565 = vsel %vm531, %v555, 0.0
  %566 = vadd.xlane.f32.xlu0 %v565
  %v567 = vpop.xlane.xlu0 %566
  %v568 = vrcp.pop %v558
  %v569 = vrcp.pop %v561
  %v570 = vrcp.pop %v564
  %v571 = vrcp.pop %v567
  %v572 = vmul.f32 %v549, %v568
  %v573 = vmul.f32 %v551, %v569
  %v574 = vmul.f32 %v553, %v570
  %v575 = vmul.f32 %v555, %v571
  %v577 = vsel %vm531, %v572, 0
  %v580 = vsel %vm531, %v573, 0
  %v583 = vsel %vm531, %v574, 0
  %v586 = vsel %vm531, %v575, 0
  %588 = vmatprep.subr.mxu0 0.0
  %589 = vmatpush1.msra.mxu0 %v399
  %590 = vmatprep.subr.mxu0 0.0
  %591 = vmatpush1.msra.mxu0 %v404
  %592 = vmatprep.subr.mxu0 0.0
  %593 = vmatpush1.msra.mxu0 %v409
  %594 = vmatprep.subr.mxu0 0.0
  %595 = vmatpush1.msra.mxu0 %v414
  %596 = vmatprep.subr.mxu0 0.0
  %597 = vmatpush1.msra.mxu0 0.0
  %598 = vmatprep.subr.mxu0 0.0
  %599 = vmatpush1.msra.mxu0 0.0
  %600 = vmatprep.subr.mxu0 0.0
  %601 = vmatpush1.msra.mxu0 0.0
  %602 = vmatprep.subr.mxu0 0.0
  %603 = vmatpush1.msra.mxu0 0.0
  %604 = vmatprep.subr.mxu0 0.0
  %605 = vmatpush1.msra.mxu0 0.0
  %606 = vmatprep.subr.mxu0 0.0
  %607 = vmatpush1.msra.mxu0 0.0
  %608 = vmatprep.subr.mxu0 0.0
  %609 = vmatpush1.msra.mxu0 0.0
  %610 = vmatprep.subr.mxu0 0.0
  %611 = vmatpush1.msra.mxu0 0.0
  %612 = vmatprep.subr.mxu0 0.0
  %613 = vmatpush1.msra.mxu0 0.0
  %614 = vmatprep.subr.mxu0 0.0
  %615 = vmatpush1.msra.mxu0 0.0
  %616 = vmatprep.subr.mxu0 0.0
  %617 = vmatpush1.msra.mxu0 0.0
  %618 = vmatprep.subr.mxu0 0.0
  %619 = vmatpush1.msra.mxu0 0.0
  %620 = vmatprep.subr.mxu0 0.0
  %621 = vmatpush1.msra.mxu0 0.0
  %622 = vmatprep.subr.mxu0 0.0
  %623 = vmatpush1.msra.mxu0 0.0
  %624 = vmatprep.subr.mxu0 0.0
  %625 = vmatpush1.msra.mxu0 0.0
  %626 = vmatprep.subr.mxu0 0.0
  %627 = vmatpush1.msra.mxu0 0.0
  %628 = vmatprep.subr.mxu0 0.0
  %629 = vmatpush1.msra.mxu0 0.0
  %630 = vmatprep.subr.mxu0 0.0
  %631 = vmatpush1.msra.mxu0 0.0
  %632 = vmatprep.subr.mxu0 0.0
  %633 = vmatpush1.msra.mxu0 0.0
  %634 = vmatprep.subr.mxu0 0.0
  %635 = vmatpush1.msra.mxu0 0.0
  %636 = vmatprep.subr.mxu0 0.0
  %637 = vmatpush1.msra.mxu0 0.0
  %638 = vmatprep.subr.mxu0 0.0
  %639 = vmatpush1.msra.mxu0 0.0
  %640 = vmatprep.subr.mxu0 0.0
  %641 = vmatpush1.msra.mxu0 0.0
  %642 = vmatprep.subr.mxu0 0.0
  %643 = vmatpush1.msra.mxu0 0.0
  %644 = vmatprep.subr.mxu0 0.0
  %645 = vmatpush1.msra.mxu0 0.0
  %646 = vmatprep.subr.mxu0 0.0
  %647 = vmatpush1.msra.mxu0 0.0
  %648 = vmatprep.subr.mxu0 0.0
  %649 = vmatpush1.msra.mxu0 0.0
  %650 = vmatprep.subr.mxu0 0.0
  %651 = vmatpush1.msra.mxu0 0.0
  %652 = vmatprep.mubr.f32.mxu0 0.0
  %653 = vmatmul.mubr.f32.gmra.mrb[0].mxu0 %v577
  %v654 = vpop.f32.mrb[0].mxu0
  %v655 = vadd.f32 0.0, %v654
  %v656 = vpop.f32.mrb[0].mxu0
  %657 = vmatprep.mubr.f32.mxu0 0.0
  %658 = vmatmul.mubr.f32.gmra.mrb[0].mxu0 %v580
  %v659 = vpop.f32.mrb[0].mxu0
  %v660 = vadd.f32 0.0, %v659
  %v661 = vpop.f32.mrb[0].mxu0
  %662 = vmatprep.mubr.f32.mxu0 0.0
  %663 = vmatmul.mubr.f32.gmra.mrb[0].mxu0 %v583
  %v664 = vpop.f32.mrb[0].mxu0
  %v665 = vadd.f32 0.0, %v664
  %v666 = vpop.f32.mrb[0].mxu0
  %667 = vmatprep.mubr.f32.mxu0 0.0
  %668 = vmatmul.mubr.f32.gmra.mrb[0].mxu0 %v586
  %v669 = vpop.f32.mrb[0].mxu0
  %v670 = vadd.f32 0.0, %v669
  %v671 = vpop.f32.mrb[0].mxu0
  %672 = vdwg.mxu0
  %673 = vrot.lane.b32.xlu0 %v157, 64
  %v674 = vpop.permute.xlu0 %673
  %675 = vrot.lane.b32.xlu0 %v162, 64
  %v676 = vpop.permute.xlu0 %675
  %677 = vrot.lane.b32.xlu0 %v167, 64
  %v678 = vpop.permute.xlu0 %677
  %679 = vrot.lane.b32.xlu0 %v172, 64
  %v680 = vpop.permute.xlu0 %679
  %681 = vrot.lane.b32.xlu0 %v278, 64
  %v682 = vpop.permute.xlu0 %681
  %683 = vrot.lane.b32.xlu0 %v283, 64
  %v684 = vpop.permute.xlu0 %683
  %685 = vrot.lane.b32.xlu0 %v288, 64
  %v686 = vpop.permute.xlu0 %685
  %687 = vrot.lane.b32.xlu0 %v293, 64
  %v688 = vpop.permute.xlu0 %687
  %v689 = vsel %vm421, %v674, 0
  %v691 = vsel %vm421, %v676, 0
  %v693 = vsel %vm421, %v678, 0
  %v695 = vsel %vm421, %v680, 0
  %v697 = vsel %vm421, %v682, 0
  %v699 = vsel %vm421, %v684, 0
  %v701 = vsel %vm421, %v686, 0
  %v703 = vsel %vm421, %v688, 0
  %705 = vmatprep.subr.mxu0 0.0
  %706 = vmatpush1.xpose.msra.mxu0 %v697
  %707 = vmatprep.subr.mxu0 0.0
  %708 = vmatpush1.xpose.msra.mxu0 %v699
  %709 = vmatprep.subr.mxu0 0.0
  %710 = vmatpush1.xpose.msra.mxu0 %v701
  %711 = vmatprep.subr.mxu0 0.0
  %712 = vmatpush1.xpose.msra.mxu0 %v703
  %713 = vmatprep.subr.mxu0 0.0
  %714 = vmatpush1.xpose.msra.mxu0 0.0
  %715 = vmatprep.subr.mxu0 0.0
  %716 = vmatpush1.xpose.msra.mxu0 0.0
  %717 = vmatprep.subr.mxu0 0.0
  %718 = vmatpush1.xpose.msra.mxu0 0.0
  %719 = vmatprep.subr.mxu0 0.0
  %720 = vmatpush1.xpose.msra.mxu0 0.0
  %721 = vmatprep.subr.mxu0 0.0
  %722 = vmatpush1.xpose.msra.mxu0 0.0
  %723 = vmatprep.subr.mxu0 0.0
  %724 = vmatpush1.xpose.msra.mxu0 0.0
  %725 = vmatprep.subr.mxu0 0.0
  %726 = vmatpush1.xpose.msra.mxu0 0.0
  %727 = vmatprep.subr.mxu0 0.0
  %728 = vmatpush1.xpose.msra.mxu0 0.0
  %729 = vmatprep.subr.mxu0 0.0
  %730 = vmatpush1.xpose.msra.mxu0 0.0
  %731 = vmatprep.subr.mxu0 0.0
  %732 = vmatpush1.xpose.msra.mxu0 0.0
  %733 = vmatprep.subr.mxu0 0.0
  %734 = vmatpush1.xpose.msra.mxu0 0.0
  %735 = vmatprep.subr.mxu0 0.0
  %736 = vmatpush1.xpose.msra.mxu0 0.0
  %737 = vmatprep.subr.mxu0 0.0
  %738 = vmatpush1.xpose.msra.mxu0 0.0
  %739 = vmatprep.subr.mxu0 0.0
  %740 = vmatpush1.xpose.msra.mxu0 0.0
  %741 = vmatprep.subr.mxu0 0.0
  %742 = vmatpush1.xpose.msra.mxu0 0.0
  %743 = vmatprep.subr.mxu0 0.0
  %744 = vmatpush1.xpose.msra.mxu0 0.0
  %745 = vmatprep.subr.mxu0 0.0
  %746 = vmatpush1.xpose.msra.mxu0 0.0
  %747 = vmatprep.subr.mxu0 0.0
  %748 = vmatpush1.xpose.msra.mxu0 0.0
  %749 = vmatprep.subr.mxu0 0.0
  %750 = vmatpush1.xpose.msra.mxu0 0.0
  %751 = vmatprep.subr.mxu0 0.0
  %752 = vmatpush1.xpose.msra.mxu0 0.0
  %753 = vmatprep.subr.mxu0 0.0
  %754 = vmatpush1.xpose.msra.mxu0 0.0
  %755 = vmatprep.subr.mxu0 0.0
  %756 = vmatpush1.xpose.msra.mxu0 0.0
  %757 = vmatprep.subr.mxu0 0.0
  %758 = vmatpush1.xpose.msra.mxu0 0.0
  %759 = vmatprep.subr.mxu0 0.0
  %760 = vmatpush1.xpose.msra.mxu0 0.0
  %761 = vmatprep.subr.mxu0 0.0
  %762 = vmatpush1.xpose.msra.mxu0 0.0
  %763 = vmatprep.subr.mxu0 0.0
  %764 = vmatpush1.xpose.msra.mxu0 0.0
  %765 = vmatprep.subr.mxu0 0.0
  %766 = vmatpush1.xpose.msra.mxu0 0.0
  %767 = vmatprep.subr.mxu0 0.0
  %768 = vmatpush1.xpose.msra.mxu0 0.0
  %769 = vmatprep.mubr.f32.mxu0 0.0
  %770 = vmatmul.mubr.f32.gmra.mrb[0].mxu0 %v689
  %v771 = vpop.f32.mrb[0].mxu0
  %v772 = vadd.f32 %v417, %v771
  %v773 = vpop.f32.mrb[0].mxu0
  %774 = vmatprep.mubr.f32.mxu0 0.0
  %775 = vmatmul.mubr.f32.gmra.mrb[0].mxu0 %v691
  %v776 = vpop.f32.mrb[0].mxu0
  %v777 = vadd.f32 %v418, %v776
  %v778 = vpop.f32.mrb[0].mxu0
  %779 = vmatprep.mubr.f32.mxu0 0.0
  %780 = vmatmul.mubr.f32.gmra.mrb[0].mxu0 %v693
  %v781 = vpop.f32.mrb[0].mxu0
  %v782 = vadd.f32 %v419, %v781
  %v783 = vpop.f32.mrb[0].mxu0
  %784 = vmatprep.mubr.f32.mxu0 0.0
  %785 = vmatmul.mubr.f32.gmra.mrb[0].mxu0 %v695
  %v786 = vpop.f32.mrb[0].mxu0
  %v787 = vadd.f32 %v420, %v786
  %v788 = vpop.f32.mrb[0].mxu0
  %789 = vdwg.mxu0
  %v790 = vsel %vm531, %v772, -inf
  %791 = vmax.xlane.f32.xlu0 %v790
  %v792 = vpop.xlane.xlu0 %791
  %v793 = vsel %vm531, %v777, -inf
  %794 = vmax.xlane.f32.xlu0 %v793
  %v795 = vpop.xlane.xlu0 %794
  %v796 = vsel %vm531, %v782, -inf
  %797 = vmax.xlane.f32.xlu0 %v796
  %v798 = vpop.xlane.xlu0 %797
  %v799 = vsel %vm531, %v787, -inf
  %800 = vmax.xlane.f32.xlu0 %v799
  %v801 = vpop.xlane.xlu0 %800
  %v802 = vsub.f32 %v772, %v792
  %v803 = vsub.f32 %v777, %v795
  %v804 = vsub.f32 %v782, %v798
  %v805 = vsub.f32 %v787, %v801
  %v806 = vmul.f32 %v802, 1.442695
  %v807 = vpow.pop %v806
  %v808 = vmul.f32 %v803, 1.442695
  %v809 = vpow.pop %v808
  %v810 = vmul.f32 %v804, 1.442695
  %v811 = vpow.pop %v810
  %v812 = vmul.f32 %v805, 1.442695
  %v813 = vpow.pop %v812
  %v814 = vsel %vm531, %v807, 0.0
  %815 = vadd.xlane.f32.xlu0 %v814
  %v816 = vpop.xlane.xlu0 %815
  %v817 = vsel %vm531, %v809, 0.0
  %818 = vadd.xlane.f32.xlu0 %v817
  %v819 = vpop.xlane.xlu0 %818
  %v820 = vsel %vm531, %v811, 0.0
  %821 = vadd.xlane.f32.xlu0 %v820
  %v822 = vpop.xlane.xlu0 %821
  %v823 = vsel %vm531, %v813, 0.0
  %824 = vadd.xlane.f32.xlu0 %v823
  %v825 = vpop.xlane.xlu0 %824
  %v826 = vrcp.pop %v816
  %v827 = vrcp.pop %v819
  %v828 = vrcp.pop %v822
  %v829 = vrcp.pop %v825
  %v830 = vmul.f32 %v807, %v826
  %v831 = vmul.f32 %v809, %v827
  %v832 = vmul.f32 %v811, %v828
  %v833 = vmul.f32 %v813, %v829
  %838 = vrot.lane.b32.xlu0 %v399, 64
  %v839 = vpop.permute.xlu0 %838
  %840 = vrot.lane.b32.xlu0 %v404, 64
  %v841 = vpop.permute.xlu0 %840
  %842 = vrot.lane.b32.xlu0 %v409, 64
  %v843 = vpop.permute.xlu0 %842
  %844 = vrot.lane.b32.xlu0 %v414, 64
  %v845 = vpop.permute.xlu0 %844
  %v851 = vsel %vm531, %v830, 0
  %v854 = vsel %vm531, %v831, 0
  %v857 = vsel %vm531, %v832, 0
  %v860 = vsel %vm531, %v833, 0
  %862 = vmatprep.subr.mxu0 0.0
  %863 = vmatpush1.msra.mxu0 %v839
  %864 = vmatprep.subr.mxu0 0.0
  %865 = vmatpush1.msra.mxu0 %v841
  %866 = vmatprep.subr.mxu0 0.0
  %867 = vmatpush1.msra.mxu0 %v843
  %868 = vmatprep.subr.mxu0 0.0
  %869 = vmatpush1.msra.mxu0 %v845
  %870 = vmatprep.subr.mxu0 0.0
  %871 = vmatpush1.msra.mxu0 0.0
  %872 = vmatprep.subr.mxu0 0.0
  %873 = vmatpush1.msra.mxu0 0.0
  %874 = vmatprep.subr.mxu0 0.0
  %875 = vmatpush1.msra.mxu0 0.0
  %876 = vmatprep.subr.mxu0 0.0
  %877 = vmatpush1.msra.mxu0 0.0
  %878 = vmatprep.subr.mxu0 0.0
  %879 = vmatpush1.msra.mxu0 0.0
  %880 = vmatprep.subr.mxu0 0.0
  %881 = vmatpush1.msra.mxu0 0.0
  %882 = vmatprep.subr.mxu0 0.0
  %883 = vmatpush1.msra.mxu0 0.0
  %884 = vmatprep.subr.mxu0 0.0
  %885 = vmatpush1.msra.mxu0 0.0
  %886 = vmatprep.subr.mxu0 0.0
  %887 = vmatpush1.msra.mxu0 0.0
  %888 = vmatprep.subr.mxu0 0.0
  %889 = vmatpush1.msra.mxu0 0.0
  %890 = vmatprep.subr.mxu0 0.0
  %891 = vmatpush1.msra.mxu0 0.0
  %892 = vmatprep.subr.mxu0 0.0
  %893 = vmatpush1.msra.mxu0 0.0
  %894 = vmatprep.subr.mxu0 0.0
  %895 = vmatpush1.msra.mxu0 0.0
  %896 = vmatprep.subr.mxu0 0.0
  %897 = vmatpush1.msra.mxu0 0.0
  %898 = vmatprep.subr.mxu0 0.0
  %899 = vmatpush1.msra.mxu0 0.0
  %900 = vmatprep.subr.mxu0 0.0
  %901 = vmatpush1.msra.mxu0 0.0
  %902 = vmatprep.subr.mxu0 0.0
  %903 = vmatpush1.msra.mxu0 0.0
  %904 = vmatprep.subr.mxu0 0.0
  %905 = vmatpush1.msra.mxu0 0.0
  %906 = vmatprep.subr.mxu0 0.0
  %907 = vmatpush1.msra.mxu0 0.0
  %908 = vmatprep.subr.mxu0 0.0
  %909 = vmatpush1.msra.mxu0 0.0
  %910 = vmatprep.subr.mxu0 0.0
  %911 = vmatpush1.msra.mxu0 0.0
  %912 = vmatprep.subr.mxu0 0.0
  %913 = vmatpush1.msra.mxu0 0.0
  %914 = vmatprep.subr.mxu0 0.0
  %915 = vmatpush1.msra.mxu0 0.0
  %916 = vmatprep.subr.mxu0 0.0
  %917 = vmatpush1.msra.mxu0 0.0
  %918 = vmatprep.subr.mxu0 0.0
  %919 = vmatpush1.msra.mxu0 0.0
  %920 = vmatprep.subr.mxu0 0.0
  %921 = vmatpush1.msra.mxu0 0.0
  %922 = vmatprep.subr.mxu0 0.0
  %923 = vmatpush1.msra.mxu0 0.0
  %924 = vmatprep.subr.mxu0 0.0
  %925 = vmatpush1.msra.mxu0 0.0
  %926 = vmatprep.mubr.f32.mxu0 0.0
  %927 = vmatmul.mubr.f32.gmra.mrb[0].mxu0 %v851
  %v928 = vpop.f32.mrb[0].mxu0
  %v929 = vadd.f32 0.0, %v928
  %v930 = vpop.f32.mrb[0].mxu0
  %931 = vmatprep.mubr.f32.mxu0 0.0
  %932 = vmatmul.mubr.f32.gmra.mrb[0].mxu0 %v854
  %v933 = vpop.f32.mrb[0].mxu0
  %v934 = vadd.f32 0.0, %v933
  %v935 = vpop.f32.mrb[0].mxu0
  %936 = vmatprep.mubr.f32.mxu0 0.0
  %937 = vmatmul.mubr.f32.gmra.mrb[0].mxu0 %v857
  %v938 = vpop.f32.mrb[0].mxu0
  %v939 = vadd.f32 0.0, %v938
  %v940 = vpop.f32.mrb[0].mxu0
  %941 = vmatprep.mubr.f32.mxu0 0.0
  %942 = vmatmul.mubr.f32.gmra.mrb[0].mxu0 %v860
  %v943 = vpop.f32.mrb[0].mxu0
  %v944 = vadd.f32 0.0, %v943
  %v945 = vpop.f32.mrb[0].mxu0
  %946 = vdwg.mxu0
  %951 = vrot.lane.b32.xlu0 %v929, 64
  %v952 = vpop.permute.xlu0 %951
  %953 = vrot.lane.b32.xlu0 %v934, 64
  %v954 = vpop.permute.xlu0 %953
  %955 = vrot.lane.b32.xlu0 %v939, 64
  %v956 = vpop.permute.xlu0 %955
  %957 = vrot.lane.b32.xlu0 %v944, 64
  %v958 = vpop.permute.xlu0 %957
  %v963 = vsel %vm421, %v655, %v952
  %v964 = vsel %vm421, %v660, %v954
  %v965 = vsel %vm421, %v665, %v956
  %v966 = vsel %vm421, %v670, %v958
  %v967 = vld [vmem:[%s7] sm:$0xff]
  %v968 = vld [vmem:[%s7 + $0x8] sm:$0xff]
  %v969 = vld [vmem:[%s8] sm:$0xff]
  %v970 = vld [vmem:[%s8 + $0x8] sm:$0xff]
  %972 = vset.pattern.permute.xlu0 0
  %973 = vperm.xlu0 %972, %v969
  %v974 = vpop.permute.xlu0 %973
  %977 = vset.pattern.permute.xlu0 0
  %978 = vperm.xlu0 %977, %v970
  %v979 = vpop.permute.xlu0 %978
  %v982 = vsel %vm531, %v967, 0
  %v985 = vsel %vm531, %v968, 0
  %987 = vmatprep.subr.mxu0 0.0
  %988 = vmatpush1.msra.mxu0 %v963
  %989 = vmatprep.subr.mxu0 0.0
  %990 = vmatpush1.msra.mxu0 %v964
  %991 = vmatprep.subr.mxu0 0.0
  %992 = vmatpush1.msra.mxu0 %v965
  %993 = vmatprep.subr.mxu0 0.0
  %994 = vmatpush1.msra.mxu0 %v966
  %995 = vmatprep.subr.mxu0 0.0
  %996 = vmatpush1.msra.mxu0 0.0
  %997 = vmatprep.subr.mxu0 0.0
  %998 = vmatpush1.msra.mxu0 0.0
  %999 = vmatprep.subr.mxu0 0.0
  %1000 = vmatpush1.msra.mxu0 0.0
  %1001 = vmatprep.subr.mxu0 0.0
  %1002 = vmatpush1.msra.mxu0 0.0
  %1003 = vmatprep.subr.mxu0 0.0
  %1004 = vmatpush1.msra.mxu0 0.0
  %1005 = vmatprep.subr.mxu0 0.0
  %1006 = vmatpush1.msra.mxu0 0.0
  %1007 = vmatprep.subr.mxu0 0.0
  %1008 = vmatpush1.msra.mxu0 0.0
  %1009 = vmatprep.subr.mxu0 0.0
  %1010 = vmatpush1.msra.mxu0 0.0
  %1011 = vmatprep.subr.mxu0 0.0
  %1012 = vmatpush1.msra.mxu0 0.0
  %1013 = vmatprep.subr.mxu0 0.0
  %1014 = vmatpush1.msra.mxu0 0.0
  %1015 = vmatprep.subr.mxu0 0.0
  %1016 = vmatpush1.msra.mxu0 0.0
  %1017 = vmatprep.subr.mxu0 0.0
  %1018 = vmatpush1.msra.mxu0 0.0
  %1019 = vmatprep.subr.mxu0 0.0
  %1020 = vmatpush1.msra.mxu0 0.0
  %1021 = vmatprep.subr.mxu0 0.0
  %1022 = vmatpush1.msra.mxu0 0.0
  %1023 = vmatprep.subr.mxu0 0.0
  %1024 = vmatpush1.msra.mxu0 0.0
  %1025 = vmatprep.subr.mxu0 0.0
  %1026 = vmatpush1.msra.mxu0 0.0
  %1027 = vmatprep.subr.mxu0 0.0
  %1028 = vmatpush1.msra.mxu0 0.0
  %1029 = vmatprep.subr.mxu0 0.0
  %1030 = vmatpush1.msra.mxu0 0.0
  %1031 = vmatprep.subr.mxu0 0.0
  %1032 = vmatpush1.msra.mxu0 0.0
  %1033 = vmatprep.subr.mxu0 0.0
  %1034 = vmatpush1.msra.mxu0 0.0
  %1035 = vmatprep.subr.mxu0 0.0
  %1036 = vmatpush1.msra.mxu0 0.0
  %1037 = vmatprep.subr.mxu0 0.0
  %1038 = vmatpush1.msra.mxu0 0.0
  %1039 = vmatprep.subr.mxu0 0.0
  %1040 = vmatpush1.msra.mxu0 0.0
  %1041 = vmatprep.subr.mxu0 0.0
  %1042 = vmatpush1.msra.mxu0 0.0
  %1043 = vmatprep.subr.mxu0 0.0
  %1044 = vmatpush1.msra.mxu0 0.0
  %1045 = vmatprep.subr.mxu0 0.0
  %1046 = vmatpush1.msra.mxu0 0.0
  %1047 = vmatprep.subr.mxu0 0.0
  %1048 = vmatpush1.msra.mxu0 0.0
  %1049 = vmatprep.subr.mxu0 0.0
  %1050 = vmatpush1.msra.mxu0 0.0
  %1051 = vmatprep.mubr.f32.mxu0 0.0
  %1052 = vmatmul.mubr.f32.gmra.mrb[0].mxu0 %v982
  %v1053 = vpop.f32.mrb[0].mxu0
  %v1054 = vadd.f32 %v974, %v1053
  %v1055 = vpop.f32.mrb[0].mxu0
  %1056 = vmatprep.mubr.f32.mxu0 0.0
  %1057 = vmatmul.mubr.f32.gmra.mrb[0].mxu0 %v985
  %v1058 = vpop.f32.mrb[0].mxu0
  %v1059 = vadd.f32 %v979, %v1058
  %v1060 = vpop.f32.mrb[0].mxu0
  %1061 = vdwg.mxu0
  %v1062 = vadd.f32 %v35, %v1054
  %v1063 = vadd.f32 %v36, %v1059
  %1064 = vst [vmem:[%s10] sm:$0xff] %v1062
  %1065 = vst [vmem:[%s10 + $0x8] sm:$0xff] %v1063
  // Predicated region
  $region42: #{multi_head_attention_2d_cha.1} parent=0 // pred_check
    _
  $region43: #{multi_head_attention_2d_cha.1} parent=0 // pred_check_branch
    %1067 = sbr.rel (0) target = $region45
  $region44: #{multi_head_attention_2d_cha.1} parent=0 // pred_region
    _
  $region45: #{multi_head_attention_2d_cha.1} parent=0 // pred_fallthru
    _
  // Predicated region
  $region46: #{multi_head_attention_2d_cha.1} parent=0 // pred_check
    _
  $region47: #{multi_head_attention_2d_cha.1} parent=0 // pred_check_branch
    %1069 = sbr.rel (0) target = $region49
  $region48: #{multi_head_attention_2d_cha.1} parent=0 // pred_region
    _
  $region49: #{multi_head_attention_2d_cha.1} parent=0 // pred_fallthru
    _

</llo_original>
